<compile_context>
chip_gen: v7x
topology: tpu7x:2x2x1
jax: 0.10.0
libtpu: 0.0.40
codegen_flags: <defaults>
</compile_context>

<pallas_src>
import numpy as np

import jax
import jax.numpy as jnp
from jax.experimental import pallas as pl
from jax.experimental.pallas import tpu as pltpu

# Explicit VMEM placement for all operands (enum name differs across jax versions).
if hasattr(pltpu, "MemorySpace"):
    _VMEM_SPEC = pl.BlockSpec(memory_space=pltpu.MemorySpace.VMEM)
elif hasattr(pltpu, "TPUMemorySpace"):
    _VMEM_SPEC = pl.BlockSpec(memory_space=pltpu.TPUMemorySpace.VMEM)
else:  # fall back to default placement (VMEM on TPU for blocked operands)
    _VMEM_SPEC = pl.BlockSpec()


def _fused_kernel(x1_ref, w1_ref, b1_ref, sel1_ref,
                  w2t0_ref, w2t1_ref, w2t2_ref, b2_ref, sel2_ref, o_ref):
    """Fused conv1+relu+pool1+conv2+relu+pool2 for the whole lane-packed batch."""
    blk = sel1_ref.shape[1] // 3        # 128-aligned lane-block width of the fused pools

    # ---- Conv1(k=3, pad=1) + bias + ReLU: ONE merged-tap MXU matmul ----
    y1 = jnp.dot(w1_ref[...], x1_ref[...], preferred_element_type=jnp.float32)
    y1 = jnp.maximum(y1 + b1_ref[...], 0.0)                       # (C1, N*L0), >= 0

    # ---- Pool-1 (k=3, s=2, pad=1): ONE fused selection matmul + 3-way VPU max ----
    # NOTE: zero columns stand in for -inf pool padding ONLY because the ReLU above
    # guarantees y1 >= 0; the pool must stay after the ReLU.
    z1 = jnp.dot(y1, sel1_ref[...], preferred_element_type=jnp.float32)   # (C1, 3*blk)
    p = jnp.maximum(jnp.maximum(z1[:, 0:blk], z1[:, blk:2 * blk]),
                    z1[:, 2 * blk:3 * blk])
    # p: (C1, blk) in per-element zero-GUARDED layout [0, d_0..d_{L1-1}, 0]; the guard
    # columns double as conv-2's zero padding below (unused lanes are exact zeros).

    # ---- Conv2(k=3, pad=1) + bias + ReLU: sum of three tap matmuls; the +/-1 tap
    # shifts are whole-row XLU rolls, per-element correct thanks to the guard columns
    # (no unaligned lane slicing or per-batch concatenation). ----
    y2 = (jnp.dot(w2t0_ref[...], pltpu.roll(p, 1, axis=1),
                  preferred_element_type=jnp.float32)
          + jnp.dot(w2t1_ref[...], p, preferred_element_type=jnp.float32)
          + jnp.dot(w2t2_ref[...], pltpu.roll(p, blk - 1, axis=1),
                    preferred_element_type=jnp.float32)
          + b2_ref[...])
    y2 = jnp.maximum(y2, 0.0)                                     # (C2, blk), >= 0
    # (Guard/unused columns of y2 hold junk; sel2 has zero rows there, so it is ignored.)

    # ---- Pool-2: fused selection matmul + VPU max; lane-dense result in the first
    # N*L2 lanes of the 128-wide output slab (rest exact zeros). ----
    z2 = jnp.dot(y2, sel2_ref[...], preferred_element_type=jnp.float32)   # (C2, 3*blk)
    o_ref[...] = jnp.maximum(jnp.maximum(z2[:, 0:blk], z2[:, blk:2 * blk]),
                             z2[:, 2 * blk:3 * blk])


def _fused_pool_select(n, lin, lout, in_rows, in_col, out_col, blk):
    """0/1 matrix S of shape (in_rows, 3*blk) such that, for a NON-NEGATIVE lane-packed
    input y of shape (C, in_rows), the max over the three blk-wide lane blocks of y @ S
    implements per-batch-element MaxPool1d(kernel=3, stride=2, padding=1).
    Each pool-window tap s lives in its own 128-aligned lane block, so the in-kernel
    3-way max is two whole-vreg jnp.maximum ops."""
    m = np.zeros((in_rows, 3 * blk), np.float32)
    for s in range(3):
        for b in range(n):
            for j in range(lout):
                i = 2 * j - 1 + s                 # pool-window tap position
                if 0 <= i < lin:
                    m[in_col(b, i), s * blk + out_col(b, j)] = 1.0
    return jnp.asarray(m)


def _fused_feature_extractor(x, w1, b1, w2, b2):
    """x: (N, 20, L); w1: (32, 20, 3); b1: (32,); w2: (64, 32, 3); b2: (64,)."""
    n, c0, l0 = x.shape
    c1 = w1.shape[0]
    c2 = w2.shape[0]
    l1 = (l0 - 1) // 2 + 1            # MaxPool1d(k=3, s=2, p=1) output length
    l2 = (l1 - 1) // 2 + 1
    w1g = l1 + 2                      # guarded per-element width after pool-1

    # 128-aligned lane-block width shared by the guarded intermediate and the output.
    blk = 128 * max(1, -(-(n * w1g) // 128), -(-(n * l2) // 128))
    # NOTE(scaling): the dense fused selection constants are O(N^2); to scale the batch
    # enough to fill the MXU lanes (N*L0 >= 128/256), switch to per-element selection
    # matrices shared via an index_map over a "parallel" batch grid axis (which also
    # shards across the two TensorCores on v7x) instead of growing these constants.

    x = x.astype(jnp.float32)

    # Layer-1 zero pad + im2col (layout plumbing, done once outside the kernel):
    # rows grouped by conv tap, columns lane-packed as (batch, position).
    xp = jnp.pad(x, ((0, 0), (0, 0), (1, 1)))                               # (N, C0, L0+2)
    x1 = jnp.concatenate([xp[:, :, t:t + l0] for t in range(3)], axis=1)    # (N, 3*C0, L0)
    x1 = jnp.transpose(x1, (1, 0, 2)).reshape(3 * c0, n * l0)               # (3*C0, N*L0)

    # Merged-tap conv-1 weight, per-tap conv-2 weights, column biases.
    w1c = jnp.concatenate([w1[:, :, t].astype(jnp.float32) for t in range(3)], axis=1)
    w2t0 = w2[:, :, 0].astype(jnp.float32)
    w2t1 = w2[:, :, 1].astype(jnp.float32)
    w2t2 = w2[:, :, 2].astype(jnp.float32)
    b1c = b1.astype(jnp.float32).reshape(c1, 1)
    b2c = b2.astype(jnp.float32).reshape(c2, 1)
    # TODO(synk): on v6e/v7x, casting x1/w1c/w2t*/sel* to bfloat16 (keeping f32
    # accumulation via preferred_element_type) would use the native MXU dtype and halve
    # constant bytes once the batch is scaled up; kept f32 here to preserve accuracy.

    # Fused pool selection constants (exact 0/1 values):
    #  pool-1 writes into the zero-guarded layout so the guards double as conv-2 padding;
    #  pool-2 writes a lane-dense output into the first N*L2 lanes.
    sel1 = _fused_pool_select(
        n, l0, l1, in_rows=n * l0,
        in_col=lambda b, i: b * l0 + i,
        out_col=lambda b, j: b * w1g + 1 + j, blk=blk)           # (N*L0, 3*blk)
    sel2 = _fused_pool_select(
        n, l1, l2, in_rows=blk,
        in_col=lambda b, i: b * w1g + 1 + i,
        out_col=lambda b, j: b * l2 + j, blk=blk)                # (blk, 3*blk)

    out = pl.pallas_call(
        _fused_kernel,
        out_shape=jax.ShapeDtypeStruct((c2, blk), jnp.float32),
        in_specs=[_VMEM_SPEC] * 9,
        out_specs=_VMEM_SPEC,
    )(x1, w1c, b1c, sel1, w2t0, w2t1, w2t2, b2c, sel2)

    # Lane-packed (C2, blk) -> (N, C2, L2)  (wrapper-side layout plumbing).
    return jnp.transpose(out[:, :n * l2].reshape(c2, n, l2), (1, 0, 2))


feature_extractor_forward = jax.jit(_fused_feature_extractor)


def _reference_forward(x, w1, b1, w2, b2):
    """Plain-JAX reference for validation."""
    def conv(x, w, b):
        y = jax.lax.conv_general_dilated(
            x, w, window_strides=(1,), padding=((1, 1),),
            dimension_numbers=("NCH", "OIH", "NCH"))
        return y + b[None, :, None]

    def pool(x):
        return jax.lax.reduce_window(
            x, -jnp.inf, jax.lax.max,
            window_dimensions=(1, 1, 3), window_strides=(1, 1, 2),
            padding=((0, 0), (0, 0), (1, 1)))

    x = x.astype(jnp.float32)
    x = pool(jnp.maximum(conv(x, w1, b1), 0.0))
    x = pool(jnp.maximum(conv(x, w2, b2), 0.0))
    return x


if __name__ == "__main__":
    # Shapes implied by the module: Conv1d in_channels=20; fc in_features=192 = 64*3
    # implies input length 12 (12 -> pool -> 6 -> pool -> 3).
    N, CIN, L = 2, 20, 12
    key = jax.random.PRNGKey(0)
    kx, kw1, kb1, kw2, kb2 = jax.random.split(key, 5)

    x = jax.random.normal(kx, (N, CIN, L), dtype=jnp.float32)
    # Deterministic synthetic parameters (shapes match the nn.Conv1d definitions).
    w1 = jax.random.normal(kw1, (32, 20, 3), dtype=jnp.float32) * 0.1
    b1 = jax.random.normal(kb1, (32,), dtype=jnp.float32) * 0.1
    w2 = jax.random.normal(kw2, (64, 32, 3), dtype=jnp.float32) * 0.1
    b2 = jax.random.normal(kb2, (64,), dtype=jnp.float32) * 0.1
    # TODO(synk): self.fc (Linear 192->2) is defined in __init__ but never used in
    # forward(); not implemented.

    out = feature_extractor_forward(x, w1, b1, w2, b2)
    out = jax.block_until_ready(out)

    ref = _reference_forward(x, w1, b1, w2, b2)
    assert out.shape == (N, 64, 3), out.shape
    assert jnp.allclose(out, ref, atol=1e-3, rtol=1e-3), "mismatch vs reference"
    print("KERNEL_OK")
</pallas_src>

<mosaic_0001>
module attributes {stable_mosaic.version = 11 : i64} {
  func.func @_fused_kernel(%arg0: memref<60x24xf32, #tpu.memory_space<vmem>>, %arg1: memref<32x60xf32, #tpu.memory_space<vmem>>, %arg2: memref<32x1xf32, #tpu.memory_space<vmem>>, %arg3: memref<24x384xf32, #tpu.memory_space<vmem>>, %arg4: memref<64x32xf32, #tpu.memory_space<vmem>>, %arg5: memref<64x32xf32, #tpu.memory_space<vmem>>, %arg6: memref<64x32xf32, #tpu.memory_space<vmem>>, %arg7: memref<64x1xf32, #tpu.memory_space<vmem>>, %arg8: memref<128x384xf32, #tpu.memory_space<vmem>>, %arg9: memref<64x128xf32, #tpu.memory_space<vmem>>) attributes {dimension_semantics = [], scalar_prefetch = 0 : i64, scratch_operands = 0 : i64, tpu.core_type = #tpu.core_type<tc>} {
    %c0 = arith.constant 0 : index
    %c0_0 = arith.constant 0 : index
    %0 = vector.load %arg1[%c0, %c0_0] : memref<32x60xf32, #tpu.memory_space<vmem>>, vector<32x60xf32>
    %c0_1 = arith.constant 0 : index
    %c0_2 = arith.constant 0 : index
    %1 = vector.load %arg0[%c0_1, %c0_2] : memref<60x24xf32, #tpu.memory_space<vmem>>, vector<60x24xf32>
    %cst = arith.constant dense<0.000000e+00> : vector<32x24xf32>
    %2 = tpu.matmul %0, %1, %cst {dimension_numbers = #tpu.dot_dimension_numbers<[1], [0], [0], [1], [0, 0, 1, 1], [], []>} : vector<32x60xf32>, vector<60x24xf32>, vector<32x24xf32> -> vector<32x24xf32>
    %c0_3 = arith.constant 0 : index
    %c0_4 = arith.constant 0 : index
    %3 = vector.load %arg2[%c0_3, %c0_4] : memref<32x1xf32, #tpu.memory_space<vmem>>, vector<32x1xf32>
    %4 = vector.broadcast %3 : vector<32x1xf32> to vector<32x24xf32>
    %5 = arith.addf %2, %4 : vector<32x24xf32>
    %cst_5 = arith.constant 0.000000e+00 : f32
    %6 = vector.broadcast %cst_5 : f32 to vector<32x24xf32>
    %7 = arith.maximumf %5, %6 : vector<32x24xf32>
    %c0_6 = arith.constant 0 : index
    %c0_7 = arith.constant 0 : index
    %8 = vector.load %arg3[%c0_6, %c0_7] : memref<24x384xf32, #tpu.memory_space<vmem>>, vector<24x384xf32>
    %cst_8 = arith.constant dense<0.000000e+00> : vector<32x384xf32>
    %9 = tpu.matmul %7, %8, %cst_8 {dimension_numbers = #tpu.dot_dimension_numbers<[1], [0], [0], [1], [0, 0, 1, 1], [], []>} : vector<32x24xf32>, vector<24x384xf32>, vector<32x384xf32> -> vector<32x384xf32>
    %10 = vector.extract_strided_slice %9 {offsets = [0, 0], sizes = [32, 128], strides = [1, 1]} : vector<32x384xf32> to vector<32x128xf32>
    %11 = vector.extract_strided_slice %9 {offsets = [0, 128], sizes = [32, 128], strides = [1, 1]} : vector<32x384xf32> to vector<32x128xf32>
    %12 = arith.maximumf %10, %11 : vector<32x128xf32>
    %13 = vector.extract_strided_slice %9 {offsets = [0, 256], sizes = [32, 128], strides = [1, 1]} : vector<32x384xf32> to vector<32x128xf32>
    %14 = arith.maximumf %12, %13 : vector<32x128xf32>
    %c0_9 = arith.constant 0 : index
    %c0_10 = arith.constant 0 : index
    %15 = vector.load %arg4[%c0_9, %c0_10] : memref<64x32xf32, #tpu.memory_space<vmem>>, vector<64x32xf32>
    %c1_i32 = arith.constant 1 : i32
    %16 = tpu.dynamic_rotate %14 by %c1_i32 dim 1 : vector<32x128xf32>, i32 -> vector<32x128xf32>
    %cst_11 = arith.constant dense<0.000000e+00> : vector<64x128xf32>
    %17 = tpu.matmul %15, %16, %cst_11 {dimension_numbers = #tpu.dot_dimension_numbers<[1], [0], [0], [1], [0, 0, 1, 1], [], []>} : vector<64x32xf32>, vector<32x128xf32>, vector<64x128xf32> -> vector<64x128xf32>
    %c0_12 = arith.constant 0 : index
    %c0_13 = arith.constant 0 : index
    %18 = vector.load %arg5[%c0_12, %c0_13] : memref<64x32xf32, #tpu.memory_space<vmem>>, vector<64x32xf32>
    %cst_14 = arith.constant dense<0.000000e+00> : vector<64x128xf32>
    %19 = tpu.matmul %18, %14, %cst_14 {dimension_numbers = #tpu.dot_dimension_numbers<[1], [0], [0], [1], [0, 0, 1, 1], [], []>} : vector<64x32xf32>, vector<32x128xf32>, vector<64x128xf32> -> vector<64x128xf32>
    %20 = arith.addf %17, %19 : vector<64x128xf32>
    %c0_15 = arith.constant 0 : index
    %c0_16 = arith.constant 0 : index
    %21 = vector.load %arg6[%c0_15, %c0_16] : memref<64x32xf32, #tpu.memory_space<vmem>>, vector<64x32xf32>
    %c127_i32 = arith.constant 127 : i32
    %22 = tpu.dynamic_rotate %14 by %c127_i32 dim 1 : vector<32x128xf32>, i32 -> vector<32x128xf32>
    %cst_17 = arith.constant dense<0.000000e+00> : vector<64x128xf32>
    %23 = tpu.matmul %21, %22, %cst_17 {dimension_numbers = #tpu.dot_dimension_numbers<[1], [0], [0], [1], [0, 0, 1, 1], [], []>} : vector<64x32xf32>, vector<32x128xf32>, vector<64x128xf32> -> vector<64x128xf32>
    %24 = arith.addf %20, %23 : vector<64x128xf32>
    %c0_18 = arith.constant 0 : index
    %c0_19 = arith.constant 0 : index
    %25 = vector.load %arg7[%c0_18, %c0_19] : memref<64x1xf32, #tpu.memory_space<vmem>>, vector<64x1xf32>
    %26 = vector.broadcast %25 : vector<64x1xf32> to vector<64x128xf32>
    %27 = arith.addf %24, %26 : vector<64x128xf32>
    %cst_20 = arith.constant 0.000000e+00 : f32
    %28 = vector.broadcast %cst_20 : f32 to vector<64x128xf32>
    %29 = arith.maximumf %27, %28 : vector<64x128xf32>
    %c0_21 = arith.constant 0 : index
    %c0_22 = arith.constant 0 : index
    %30 = vector.load %arg8[%c0_21, %c0_22] : memref<128x384xf32, #tpu.memory_space<vmem>>, vector<128x384xf32>
    %cst_23 = arith.constant dense<0.000000e+00> : vector<64x384xf32>
    %31 = tpu.matmul %29, %30, %cst_23 {dimension_numbers = #tpu.dot_dimension_numbers<[1], [0], [0], [1], [0, 0, 1, 1], [], []>} : vector<64x128xf32>, vector<128x384xf32>, vector<64x384xf32> -> vector<64x384xf32>
    %32 = vector.extract_strided_slice %31 {offsets = [0, 0], sizes = [64, 128], strides = [1, 1]} : vector<64x384xf32> to vector<64x128xf32>
    %33 = vector.extract_strided_slice %31 {offsets = [0, 128], sizes = [64, 128], strides = [1, 1]} : vector<64x384xf32> to vector<64x128xf32>
    %34 = arith.maximumf %32, %33 : vector<64x128xf32>
    %35 = vector.extract_strided_slice %31 {offsets = [0, 256], sizes = [64, 128], strides = [1, 1]} : vector<64x384xf32> to vector<64x128xf32>
    %36 = arith.maximumf %34, %35 : vector<64x128xf32>
    %c0_24 = arith.constant 0 : index
    %c0_25 = arith.constant 0 : index
    %37 = vector.load %arg9[%c0_24, %c0_25] : memref<64x128xf32, #tpu.memory_space<vmem>>, vector<64x128xf32>
    tpu.vector_store %arg9[%c0_24, %c0_25], %36 {strides = array<i32>} : memref<64x128xf32, #tpu.memory_space<vmem>>, vector<64x128xf32>,
    return
  }
}

</mosaic_0001>

<llo_original>
// kernel: _fused_feature_extractor.1
$region0: #{_fused_feature_extractor.1}
  #allocation0 [shape = 'u32[]', space=smem, size = 0x4, offset = 0x4, fixed_abs, tag = 'smem constant byte address 0x4 - core index']
  #allocation1 [shape = 'u32[144,128]{1,0:T(1,128)}', space=vmem, size = 0x12000, scoped, tag = 'internal scratch']
  %s0 = inlined_call_operand.vmem [shape: f32[60,24], index: 0, kind: input, shape index: {}]
  %s1 = inlined_call_operand.vmem [shape: f32[32,60], index: 1, kind: input, shape index: {}]
  %s2 = inlined_call_operand.vmem [shape: f32[32,1], index: 2, kind: input, shape index: {}]
  %s3 = inlined_call_operand.vmem [shape: f32[24,384], index: 3, kind: input, shape index: {}]
  %s4 = inlined_call_operand.vmem [shape: f32[64,32], index: 4, kind: input, shape index: {}]
  %s5 = inlined_call_operand.vmem [shape: f32[64,32], index: 5, kind: input, shape index: {}]
  %s6 = inlined_call_operand.vmem [shape: f32[64,32], index: 6, kind: input, shape index: {}]
  %s7 = inlined_call_operand.vmem [shape: f32[64,1], index: 7, kind: input, shape index: {}]
  %s8 = inlined_call_operand.vmem [shape: f32[128,384], index: 8, kind: input, shape index: {}]
  %s9 = inlined_call_operand.vmem [shape: f32[64,128], index: 9, kind: output, shape index: {}]
  %s10 = sld [smem:[#allocation0]]
  $region46: #{_fused_feature_extractor.1} parent=0
    _
  %s12 = ssub.s32 1, %s10
  %s13 = scalar_select 0, %s12, %s10
  // Predicated region
  $region2: #{_fused_feature_extractor.1} parent=0 // pred_check
    _
  $region3: #{_fused_feature_extractor.1} parent=0 // pred_check_branch
    %15 = sbr.rel (0) target = $region5
  $region4: #{_fused_feature_extractor.1} parent=0 // pred_region
    _
  $region5: #{_fused_feature_extractor.1} parent=0 // pred_fallthru
    _
  // Predicated region
  $region6: #{_fused_feature_extractor.1} parent=0 // pred_check
    _
  $region7: #{_fused_feature_extractor.1} parent=0 // pred_check_branch
    %17 = sbr.rel (0) target = $region9
  $region8: #{_fused_feature_extractor.1} parent=0 // pred_region
    _
  $region9: #{_fused_feature_extractor.1} parent=0 // pred_fallthru
    _
  // Predicated region
  $region10: #{_fused_feature_extractor.1} parent=0 // pred_check
    _
  $region11: #{_fused_feature_extractor.1} parent=0 // pred_check_branch
    %19 = sbr.rel (0) target = $region13
  $region12: #{_fused_feature_extractor.1} parent=0 // pred_region
    _
  $region13: #{_fused_feature_extractor.1} parent=0 // pred_fallthru
    _
  // Predicated region
  $region14: #{_fused_feature_extractor.1} parent=0 // pred_check
    _
  $region15: #{_fused_feature_extractor.1} parent=0 // pred_check_branch
    %21 = sbr.rel (0) target = $region17
  $region16: #{_fused_feature_extractor.1} parent=0 // pred_region
    _
  $region17: #{_fused_feature_extractor.1} parent=0 // pred_fallthru
    _
  // Predicated region
  $region18: #{_fused_feature_extractor.1} parent=0 // pred_check
    _
  $region19: #{_fused_feature_extractor.1} parent=0 // pred_check_branch
    %23 = sbr.rel (0) target = $region21
  $region20: #{_fused_feature_extractor.1} parent=0 // pred_region
    _
  $region21: #{_fused_feature_extractor.1} parent=0 // pred_fallthru
    _
  // Predicated region
  $region22: #{_fused_feature_extractor.1} parent=0 // pred_check
    _
  $region23: #{_fused_feature_extractor.1} parent=0 // pred_check_branch
    %25 = sbr.rel (0) target = $region25
  $region24: #{_fused_feature_extractor.1} parent=0 // pred_region
    _
  $region25: #{_fused_feature_extractor.1} parent=0 // pred_fallthru
    _
  // Predicated region
  $region26: #{_fused_feature_extractor.1} parent=0 // pred_check
    _
  $region27: #{_fused_feature_extractor.1} parent=0 // pred_check_branch
    %27 = sbr.rel (0) target = $region29
  $region28: #{_fused_feature_extractor.1} parent=0 // pred_region
    _
  $region29: #{_fused_feature_extractor.1} parent=0 // pred_fallthru
    _
  // Predicated region
  $region30: #{_fused_feature_extractor.1} parent=0 // pred_check
    _
  $region31: #{_fused_feature_extractor.1} parent=0 // pred_check_branch
    %29 = sbr.rel (0) target = $region33
  $region32: #{_fused_feature_extractor.1} parent=0 // pred_region
    _
  $region33: #{_fused_feature_extractor.1} parent=0 // pred_fallthru
    _
  // Predicated region
  $region34: #{_fused_feature_extractor.1} parent=0 // pred_check
    _
  $region35: #{_fused_feature_extractor.1} parent=0 // pred_check_branch
    %31 = sbr.rel (0) target = $region37
  $region36: #{_fused_feature_extractor.1} parent=0 // pred_region
    _
  $region37: #{_fused_feature_extractor.1} parent=0 // pred_fallthru
    _
  %v32 = vld [vmem:[%s1] sm:$0xff]
  %v33 = vld [vmem:[%s1 + $0x8] sm:$0xff]
  %v34 = vld [vmem:[%s1 + $0x10] sm:$0xff]
  %v35 = vld [vmem:[%s1 + $0x18] sm:$0xff]
  %v36 = vld [vmem:[%s0] sm:$0xff]
  %v37 = vld [vmem:[%s0 + $0x8] sm:$0xff]
  %v38 = vld [vmem:[%s0 + $0x10] sm:$0xff]
  %v39 = vld [vmem:[%s0 + $0x18] sm:$0xff]
  %v40 = vld [vmem:[%s0 + $0x20] sm:$0xff]
  %v41 = vld [vmem:[%s0 + $0x28] sm:$0xff]
  %v42 = vld [vmem:[%s0 + $0x30] sm:$0xff]
  %v43 = vld [vmem:[%s0 + $0x38] sm:$0xf]
  %v44 = vld [vmem:[%s2] sm:$0xff]
  %v45 = vld [vmem:[%s2 + $0x8] sm:$0xff]
  %v46 = vld [vmem:[%s2 + $0x10] sm:$0xff]
  %v47 = vld [vmem:[%s2 + $0x18] sm:$0xff]
  %49 = vset.pattern.permute.xlu0 0
  %50 = vperm.xlu0 %49, %v44
  %v51 = vpop.permute.xlu0 %50
  %54 = vset.pattern.permute.xlu0 0
  %55 = vperm.xlu0 %54, %v45
  %v56 = vpop.permute.xlu0 %55
  %59 = vset.pattern.permute.xlu0 0
  %60 = vperm.xlu0 %59, %v46
  %v61 = vpop.permute.xlu0 %60
  %64 = vset.pattern.permute.xlu0 0
  %65 = vperm.xlu0 %64, %v47
  %v66 = vpop.permute.xlu0 %65
  %vm68 = vcmask 490496
  %v70 = vsel %vm68, %v32, 0
  %v73 = vsel %vm68, %v33, 0
  %v76 = vsel %vm68, %v34, 0
  %v79 = vsel %vm68, %v35, 0
  %vm81 = vcmask 1043456
  %v83 = vsel %vm81, %v43, 0
  %85 = vmatprep.subr.mxu0 0.0
  %86 = vmatpush1.msra.mxu0 %v36
  %87 = vmatprep.subr.mxu0 0.0
  %88 = vmatpush1.msra.mxu0 %v37
  %89 = vmatprep.subr.mxu0 0.0
  %90 = vmatpush1.msra.mxu0 %v38
  %91 = vmatprep.subr.mxu0 0.0
  %92 = vmatpush1.msra.mxu0 %v39
  %93 = vmatprep.subr.mxu0 0.0
  %94 = vmatpush1.msra.mxu0 %v40
  %95 = vmatprep.subr.mxu0 0.0
  %96 = vmatpush1.msra.mxu0 %v41
  %97 = vmatprep.subr.mxu0 0.0
  %98 = vmatpush1.msra.mxu0 %v42
  %99 = vmatprep.subr.mxu0 0.0
  %100 = vmatpush1.msra.mxu0 %v83
  %101 = vmatprep.subr.mxu0 0.0
  %102 = vmatpush1.msra.mxu0 0.0
  %103 = vmatprep.subr.mxu0 0.0
  %104 = vmatpush1.msra.mxu0 0.0
  %105 = vmatprep.subr.mxu0 0.0
  %106 = vmatpush1.msra.mxu0 0.0
  %107 = vmatprep.subr.mxu0 0.0
  %108 = vmatpush1.msra.mxu0 0.0
  %109 = vmatprep.subr.mxu0 0.0
  %110 = vmatpush1.msra.mxu0 0.0
  %111 = vmatprep.subr.mxu0 0.0
  %112 = vmatpush1.msra.mxu0 0.0
  %113 = vmatprep.subr.mxu0 0.0
  %114 = vmatpush1.msra.mxu0 0.0
  %115 = vmatprep.subr.mxu0 0.0
  %116 = vmatpush1.msra.mxu0 0.0
  %117 = vmatprep.subr.mxu0 0.0
  %118 = vmatpush1.msra.mxu0 0.0
  %119 = vmatprep.subr.mxu0 0.0
  %120 = vmatpush1.msra.mxu0 0.0
  %121 = vmatprep.subr.mxu0 0.0
  %122 = vmatpush1.msra.mxu0 0.0
  %123 = vmatprep.subr.mxu0 0.0
  %124 = vmatpush1.msra.mxu0 0.0
  %125 = vmatprep.subr.mxu0 0.0
  %126 = vmatpush1.msra.mxu0 0.0
  %127 = vmatprep.subr.mxu0 0.0
  %128 = vmatpush1.msra.mxu0 0.0
  %129 = vmatprep.subr.mxu0 0.0
  %130 = vmatpush1.msra.mxu0 0.0
  %131 = vmatprep.subr.mxu0 0.0
  %132 = vmatpush1.msra.mxu0 0.0
  %133 = vmatprep.subr.mxu0 0.0
  %134 = vmatpush1.msra.mxu0 0.0
  %135 = vmatprep.subr.mxu0 0.0
  %136 = vmatpush1.msra.mxu0 0.0
  %137 = vmatprep.subr.mxu0 0.0
  %138 = vmatpush1.msra.mxu0 0.0
  %139 = vmatprep.subr.mxu0 0.0
  %140 = vmatpush1.msra.mxu0 0.0
  %141 = vmatprep.subr.mxu0 0.0
  %142 = vmatpush1.msra.mxu0 0.0
  %143 = vmatprep.subr.mxu0 0.0
  %144 = vmatpush1.msra.mxu0 0.0
  %145 = vmatprep.subr.mxu0 0.0
  %146 = vmatpush1.msra.mxu0 0.0
  %147 = vmatprep.subr.mxu0 0.0
  %148 = vmatpush1.msra.mxu0 0.0
  %149 = vmatprep.mubr.f32.mxu0 0.0
  %150 = vmatmul.mubr.f32.gmra.mrb[0].mxu0 %v70
  %v151 = vpop.f32.mrb[0].mxu0
  %v152 = vadd.f32 %v51, %v151
  %v153 = vpop.f32.mrb[0].mxu0
  %154 = vmatprep.mubr.f32.mxu0 0.0
  %155 = vmatmul.mubr.f32.gmra.mrb[0].mxu0 %v73
  %v156 = vpop.f32.mrb[0].mxu0
  %v157 = vadd.f32 %v56, %v156
  %v158 = vpop.f32.mrb[0].mxu0
  %159 = vmatprep.mubr.f32.mxu0 0.0
  %160 = vmatmul.mubr.f32.gmra.mrb[0].mxu0 %v76
  %v161 = vpop.f32.mrb[0].mxu0
  %v162 = vadd.f32 %v61, %v161
  %v163 = vpop.f32.mrb[0].mxu0
  %164 = vmatprep.mubr.f32.mxu0 0.0
  %165 = vmatmul.mubr.f32.gmra.mrb[0].mxu0 %v79
  %v166 = vpop.f32.mrb[0].mxu0
  %v167 = vadd.f32 %v66, %v166
  %v168 = vpop.f32.mrb[0].mxu0
  %169 = vdwg.mxu0
  %v170 = vmax.f32 %v152, 0.0
  %v171 = vmax.f32 %v157, 0.0
  %v172 = vmax.f32 %v162, 0.0
  %v173 = vmax.f32 %v167, 0.0
  %v174 = vld [vmem:[%s3] sm:$0xff]
  %v175 = vld [vmem:[%s3 + $0x8] sm:$0xff]
  %v176 = vld [vmem:[%s3 + $0x10] sm:$0xff]
  %v177 = vld [vmem:[%s3 + $0x18] sm:$0xff]
  %v178 = vld [vmem:[%s3 + $0x20] sm:$0xff]
  %v179 = vld [vmem:[%s3 + $0x28] sm:$0xff]
  %v180 = vld [vmem:[%s3 + $0x30] sm:$0xff]
  %v181 = vld [vmem:[%s3 + $0x38] sm:$0xff]
  %v182 = vld [vmem:[%s3 + $0x40] sm:$0xff]
  %vm183 = vcmask 195584
  %v185 = vsel %vm183, %v170, 0
  %v188 = vsel %vm183, %v171, 0
  %v191 = vsel %vm183, %v172, 0
  %v194 = vsel %vm183, %v173, 0
  %196 = vmatprep.subr.mxu0 %v175
  %197 = vmatpush1.msra.mxu0 %v174
  %198 = vmatprep.subr.mxu0 %v178
  %199 = vmatpush1.msra.mxu0 %v177
  %200 = vmatprep.subr.mxu0 %v181
  %201 = vmatpush1.msra.mxu0 %v180
  %202 = vmatprep.subr.mxu0 0.0
  %203 = vmatpush1.msra.mxu0 0.0
  %204 = vmatprep.subr.mxu0 0.0
  %205 = vmatpush1.msra.mxu0 0.0
  %206 = vmatprep.subr.mxu0 0.0
  %207 = vmatpush1.msra.mxu0 0.0
  %208 = vmatprep.subr.mxu0 0.0
  %209 = vmatpush1.msra.mxu0 0.0
  %210 = vmatprep.subr.mxu0 0.0
  %211 = vmatpush1.msra.mxu0 0.0
  %212 = vmatprep.subr.mxu0 0.0
  %213 = vmatpush1.msra.mxu0 0.0
  %214 = vmatprep.subr.mxu0 0.0
  %215 = vmatpush1.msra.mxu0 0.0
  %216 = vmatprep.subr.mxu0 0.0
  %217 = vmatpush1.msra.mxu0 0.0
  %218 = vmatprep.subr.mxu0 0.0
  %219 = vmatpush1.msra.mxu0 0.0
  %220 = vmatprep.subr.mxu0 0.0
  %221 = vmatpush1.msra.mxu0 0.0
  %222 = vmatprep.subr.mxu0 0.0
  %223 = vmatpush1.msra.mxu0 0.0
  %224 = vmatprep.subr.mxu0 0.0
  %225 = vmatpush1.msra.mxu0 0.0
  %226 = vmatprep.subr.mxu0 0.0
  %227 = vmatpush1.msra.mxu0 0.0
  %228 = vmatprep.subr.mxu0 0.0
  %229 = vmatpush1.msra.mxu0 0.0
  %230 = vmatprep.subr.mxu0 0.0
  %231 = vmatpush1.msra.mxu0 0.0
  %232 = vmatprep.subr.mxu0 0.0
  %233 = vmatpush1.msra.mxu0 0.0
  %234 = vmatprep.subr.mxu0 0.0
  %235 = vmatpush1.msra.mxu0 0.0
  %236 = vmatprep.subr.mxu0 0.0
  %237 = vmatpush1.msra.mxu0 0.0
  %238 = vmatprep.subr.mxu0 0.0
  %239 = vmatpush1.msra.mxu0 0.0
  %240 = vmatprep.subr.mxu0 0.0
  %241 = vmatpush1.msra.mxu0 0.0
  %242 = vmatprep.subr.mxu0 0.0
  %243 = vmatpush1.msra.mxu0 0.0
  %244 = vmatprep.subr.mxu0 0.0
  %245 = vmatpush1.msra.mxu0 0.0
  %246 = vmatprep.subr.mxu0 0.0
  %247 = vmatpush1.msra.mxu0 0.0
  %248 = vmatprep.subr.mxu0 0.0
  %249 = vmatpush1.msra.mxu0 0.0
  %250 = vmatprep.subr.mxu0 0.0
  %251 = vmatpush1.msra.mxu0 0.0
  %252 = vmatprep.subr.mxu0 0.0
  %253 = vmatpush1.msra.mxu0 0.0
  %254 = vmatprep.subr.mxu0 0.0
  %255 = vmatpush1.msra.mxu0 0.0
  %256 = vmatprep.subr.mxu0 0.0
  %257 = vmatpush1.msra.mxu0 0.0
  %258 = vmatprep.subr.mxu0 0.0
  %259 = vmatpush1.msra.mxu0 0.0
  %260 = vmatprep.mubr.f32.mxu0 0.0
  %261 = vmatmul.mubr.f32.gmra.mrb[0].mxu0 %v185
  %v262 = vpop.f32.mrb[0].mxu0
  %v263 = vadd.f32 0.0, %v262
  %v264 = vpop.f32.mrb[0].mxu0
  %v265 = vadd.f32 0.0, %v264
  %266 = vmatprep.mubr.f32.mxu0 0.0
  %267 = vmatmul.mubr.f32.gmra.mrb[0].mxu0 %v188
  %v268 = vpop.f32.mrb[0].mxu0
  %v269 = vadd.f32 0.0, %v268
  %v270 = vpop.f32.mrb[0].mxu0
  %v271 = vadd.f32 0.0, %v270
  %272 = vmatprep.mubr.f32.mxu0 0.0
  %273 = vmatmul.mubr.f32.gmra.mrb[0].mxu0 %v191
  %v274 = vpop.f32.mrb[0].mxu0
  %v275 = vadd.f32 0.0, %v274
  %v276 = vpop.f32.mrb[0].mxu0
  %v277 = vadd.f32 0.0, %v276
  %278 = vmatprep.mubr.f32.mxu0 0.0
  %279 = vmatmul.mubr.f32.gmra.mrb[0].mxu0 %v194
  %v280 = vpop.f32.mrb[0].mxu0
  %v281 = vadd.f32 0.0, %v280
  %v282 = vpop.f32.mrb[0].mxu0
  %v283 = vadd.f32 0.0, %v282
  %284 = vdwg.mxu0
  %285 = vmatprep.subr.mxu0 0.0
  %286 = vmatpush1.msra.mxu0 %v176
  %287 = vmatprep.subr.mxu0 0.0
  %288 = vmatpush1.msra.mxu0 %v179
  %289 = vmatprep.subr.mxu0 0.0
  %290 = vmatpush1.msra.mxu0 %v182
  %291 = vmatprep.subr.mxu0 0.0
  %292 = vmatpush1.msra.mxu0 0.0
  %293 = vmatprep.subr.mxu0 0.0
  %294 = vmatpush1.msra.mxu0 0.0
  %295 = vmatprep.subr.mxu0 0.0
  %296 = vmatpush1.msra.mxu0 0.0
  %297 = vmatprep.subr.mxu0 0.0
  %298 = vmatpush1.msra.mxu0 0.0
  %299 = vmatprep.subr.mxu0 0.0
  %300 = vmatpush1.msra.mxu0 0.0
  %301 = vmatprep.subr.mxu0 0.0
  %302 = vmatpush1.msra.mxu0 0.0
  %303 = vmatprep.subr.mxu0 0.0
  %304 = vmatpush1.msra.mxu0 0.0
  %305 = vmatprep.subr.mxu0 0.0
  %306 = vmatpush1.msra.mxu0 0.0
  %307 = vmatprep.subr.mxu0 0.0
  %308 = vmatpush1.msra.mxu0 0.0
  %309 = vmatprep.subr.mxu0 0.0
  %310 = vmatpush1.msra.mxu0 0.0
  %311 = vmatprep.subr.mxu0 0.0
  %312 = vmatpush1.msra.mxu0 0.0
  %313 = vmatprep.subr.mxu0 0.0
  %314 = vmatpush1.msra.mxu0 0.0
  %315 = vmatprep.subr.mxu0 0.0
  %316 = vmatpush1.msra.mxu0 0.0
  %317 = vmatprep.subr.mxu0 0.0
  %318 = vmatpush1.msra.mxu0 0.0
  %319 = vmatprep.subr.mxu0 0.0
  %320 = vmatpush1.msra.mxu0 0.0
  %321 = vmatprep.subr.mxu0 0.0
  %322 = vmatpush1.msra.mxu0 0.0
  %323 = vmatprep.subr.mxu0 0.0
  %324 = vmatpush1.msra.mxu0 0.0
  %325 = vmatprep.subr.mxu0 0.0
  %326 = vmatpush1.msra.mxu0 0.0
  %327 = vmatprep.subr.mxu0 0.0
  %328 = vmatpush1.msra.mxu0 0.0
  %329 = vmatprep.subr.mxu0 0.0
  %330 = vmatpush1.msra.mxu0 0.0
  %331 = vmatprep.subr.mxu0 0.0
  %332 = vmatpush1.msra.mxu0 0.0
  %333 = vmatprep.subr.mxu0 0.0
  %334 = vmatpush1.msra.mxu0 0.0
  %335 = vmatprep.subr.mxu0 0.0
  %336 = vmatpush1.msra.mxu0 0.0
  %337 = vmatprep.subr.mxu0 0.0
  %338 = vmatpush1.msra.mxu0 0.0
  %339 = vmatprep.subr.mxu0 0.0
  %340 = vmatpush1.msra.mxu0 0.0
  %341 = vmatprep.subr.mxu0 0.0
  %342 = vmatpush1.msra.mxu0 0.0
  %343 = vmatprep.subr.mxu0 0.0
  %344 = vmatpush1.msra.mxu0 0.0
  %345 = vmatprep.subr.mxu0 0.0
  %346 = vmatpush1.msra.mxu0 0.0
  %347 = vmatprep.subr.mxu0 0.0
  %348 = vmatpush1.msra.mxu0 0.0
  %349 = vmatprep.mubr.f32.mxu0 0.0
  %350 = vmatmul.mubr.f32.gmra.mrb[0].mxu0 %v185
  %v351 = vpop.f32.mrb[0].mxu0
  %v352 = vadd.f32 0.0, %v351
  %v353 = vpop.f32.mrb[0].mxu0
  %354 = vmatprep.mubr.f32.mxu0 0.0
  %355 = vmatmul.mubr.f32.gmra.mrb[0].mxu0 %v188
  %v356 = vpop.f32.mrb[0].mxu0
  %v357 = vadd.f32 0.0, %v356
  %v358 = vpop.f32.mrb[0].mxu0
  %359 = vmatprep.mubr.f32.mxu0 0.0
  %360 = vmatmul.mubr.f32.gmra.mrb[0].mxu0 %v191
  %v361 = vpop.f32.mrb[0].mxu0
  %v362 = vadd.f32 0.0, %v361
  %v363 = vpop.f32.mrb[0].mxu0
  %364 = vmatprep.mubr.f32.mxu0 0.0
  %365 = vmatmul.mubr.f32.gmra.mrb[0].mxu0 %v194
  %v366 = vpop.f32.mrb[0].mxu0
  %v367 = vadd.f32 0.0, %v366
  %v368 = vpop.f32.mrb[0].mxu0
  %369 = vdwg.mxu0
  %v370 = vmax.f32 %v263, %v265
  %v371 = vmax.f32 %v269, %v271
  %v372 = vmax.f32 %v275, %v277
  %v373 = vmax.f32 %v281, %v283
  %v374 = vmax.f32 %v370, %v352
  %v375 = vmax.f32 %v371, %v357
  %v376 = vmax.f32 %v372, %v362
  %v377 = vmax.f32 %v373, %v367
  %v378 = vld [vmem:[%s4] sm:$0xff]
  %v379 = vld [vmem:[%s4 + $0x8] sm:$0xff]
  %v380 = vld [vmem:[%s4 + $0x10] sm:$0xff]
  %v381 = vld [vmem:[%s4 + $0x18] sm:$0xff]
  %v382 = vld [vmem:[%s4 + $0x20] sm:$0xff]
  %v383 = vld [vmem:[%s4 + $0x28] sm:$0xff]
  %v384 = vld [vmem:[%s4 + $0x30] sm:$0xff]
  %v385 = vld [vmem:[%s4 + $0x38] sm:$0xff]
  %386 = vrot.lane.b32.xlu0 %v374, 1
  %v387 = vpop.permute.xlu0 %386
  %388 = vrot.lane.b32.xlu0 %v375, 1
  %v389 = vpop.permute.xlu0 %388
  %390 = vrot.lane.b32.xlu0 %v376, 1
  %v391 = vpop.permute.xlu0 %390
  %392 = vrot.lane.b32.xlu0 %v377, 1
  %v393 = vpop.permute.xlu0 %392
  %v394 = vld [vmem:[%s5] sm:$0xff]
  %v395 = vld [vmem:[%s5 + $0x8] sm:$0xff]
  %v396 = vld [vmem:[%s5 + $0x10] sm:$0xff]
  %v397 = vld [vmem:[%s5 + $0x18] sm:$0xff]
  %v398 = vld [vmem:[%s5 + $0x20] sm:$0xff]
  %v399 = vld [vmem:[%s5 + $0x28] sm:$0xff]
  %v400 = vld [vmem:[%s5 + $0x30] sm:$0xff]
  %v401 = vld [vmem:[%s5 + $0x38] sm:$0xff]
  %vm402 = vcmask 261120
  %v404 = vsel %vm402, %v394, 0
  %v407 = vsel %vm402, %v395, 0
  %v410 = vsel %vm402, %v396, 0
  %v413 = vsel %vm402, %v397, 0
  %v416 = vsel %vm402, %v398, 0
  %v419 = vsel %vm402, %v399, 0
  %v422 = vsel %vm402, %v400, 0
  %v425 = vsel %vm402, %v401, 0
  %427 = vmatprep.subr.mxu0 0.0
  %428 = vmatpush1.msra.mxu0 %v374
  %429 = vmatprep.subr.mxu0 0.0
  %430 = vmatpush1.msra.mxu0 %v375
  %431 = vmatprep.subr.mxu0 0.0
  %432 = vmatpush1.msra.mxu0 %v376
  %433 = vmatprep.subr.mxu0 0.0
  %434 = vmatpush1.msra.mxu0 %v377
  %435 = vmatprep.subr.mxu0 0.0
  %436 = vmatpush1.msra.mxu0 0.0
  %437 = vmatprep.subr.mxu0 0.0
  %438 = vmatpush1.msra.mxu0 0.0
  %439 = vmatprep.subr.mxu0 0.0
  %440 = vmatpush1.msra.mxu0 0.0
  %441 = vmatprep.subr.mxu0 0.0
  %442 = vmatpush1.msra.mxu0 0.0
  %443 = vmatprep.subr.mxu0 0.0
  %444 = vmatpush1.msra.mxu0 0.0
  %445 = vmatprep.subr.mxu0 0.0
  %446 = vmatpush1.msra.mxu0 0.0
  %447 = vmatprep.subr.mxu0 0.0
  %448 = vmatpush1.msra.mxu0 0.0
  %449 = vmatprep.subr.mxu0 0.0
  %450 = vmatpush1.msra.mxu0 0.0
  %451 = vmatprep.subr.mxu0 0.0
  %452 = vmatpush1.msra.mxu0 0.0
  %453 = vmatprep.subr.mxu0 0.0
  %454 = vmatpush1.msra.mxu0 0.0
  %455 = vmatprep.subr.mxu0 0.0
  %456 = vmatpush1.msra.mxu0 0.0
  %457 = vmatprep.subr.mxu0 0.0
  %458 = vmatpush1.msra.mxu0 0.0
  %459 = vmatprep.subr.mxu0 0.0
  %460 = vmatpush1.msra.mxu0 0.0
  %461 = vmatprep.subr.mxu0 0.0
  %462 = vmatpush1.msra.mxu0 0.0
  %463 = vmatprep.subr.mxu0 0.0
  %464 = vmatpush1.msra.mxu0 0.0
  %465 = vmatprep.subr.mxu0 0.0
  %466 = vmatpush1.msra.mxu0 0.0
  %467 = vmatprep.subr.mxu0 0.0
  %468 = vmatpush1.msra.mxu0 0.0
  %469 = vmatprep.subr.mxu0 0.0
  %470 = vmatpush1.msra.mxu0 0.0
  %471 = vmatprep.subr.mxu0 0.0
  %472 = vmatpush1.msra.mxu0 0.0
  %473 = vmatprep.subr.mxu0 0.0
  %474 = vmatpush1.msra.mxu0 0.0
  %475 = vmatprep.subr.mxu0 0.0
  %476 = vmatpush1.msra.mxu0 0.0
  %477 = vmatprep.subr.mxu0 0.0
  %478 = vmatpush1.msra.mxu0 0.0
  %479 = vmatprep.subr.mxu0 0.0
  %480 = vmatpush1.msra.mxu0 0.0
  %481 = vmatprep.subr.mxu0 0.0
  %482 = vmatpush1.msra.mxu0 0.0
  %483 = vmatprep.subr.mxu0 0.0
  %484 = vmatpush1.msra.mxu0 0.0
  %485 = vmatprep.subr.mxu0 0.0
  %486 = vmatpush1.msra.mxu0 0.0
  %487 = vmatprep.subr.mxu0 0.0
  %488 = vmatpush1.msra.mxu0 0.0
  %489 = vmatprep.subr.mxu0 0.0
  %490 = vmatpush1.msra.mxu0 0.0
  %491 = vmatprep.mubr.f32.mxu0 0.0
  %492 = vmatmul.mubr.f32.gmra.mrb[0].mxu0 %v404
  %v493 = vpop.f32.mrb[0].mxu0
  %v494 = vadd.f32 0.0, %v493
  %v495 = vpop.f32.mrb[0].mxu0
  %496 = vmatprep.mubr.f32.mxu0 0.0
  %497 = vmatmul.mubr.f32.gmra.mrb[0].mxu0 %v407
  %v498 = vpop.f32.mrb[0].mxu0
  %v499 = vadd.f32 0.0, %v498
  %v500 = vpop.f32.mrb[0].mxu0
  %501 = vmatprep.mubr.f32.mxu0 0.0
  %502 = vmatmul.mubr.f32.gmra.mrb[0].mxu0 %v410
  %v503 = vpop.f32.mrb[0].mxu0
  %v504 = vadd.f32 0.0, %v503
  %v505 = vpop.f32.mrb[0].mxu0
  %506 = vmatprep.mubr.f32.mxu0 0.0
  %507 = vmatmul.mubr.f32.gmra.mrb[0].mxu0 %v413
  %v508 = vpop.f32.mrb[0].mxu0
  %v509 = vadd.f32 0.0, %v508
  %v510 = vpop.f32.mrb[0].mxu0
  %511 = vmatprep.mubr.f32.mxu0 0.0
  %512 = vmatmul.mubr.f32.gmra.mrb[0].mxu0 %v416
  %v513 = vpop.f32.mrb[0].mxu0
  %v514 = vadd.f32 0.0, %v513
  %v515 = vpop.f32.mrb[0].mxu0
  %516 = vmatprep.mubr.f32.mxu0 0.0
  %517 = vmatmul.mubr.f32.gmra.mrb[0].mxu0 %v419
  %v518 = vpop.f32.mrb[0].mxu0
  %v519 = vadd.f32 0.0, %v518
  %v520 = vpop.f32.mrb[0].mxu0
  %521 = vmatprep.mubr.f32.mxu0 0.0
  %522 = vmatmul.mubr.f32.gmra.mrb[0].mxu0 %v422
  %v523 = vpop.f32.mrb[0].mxu0
  %v524 = vadd.f32 0.0, %v523
  %v525 = vpop.f32.mrb[0].mxu0
  %526 = vmatprep.mubr.f32.mxu0 0.0
  %527 = vmatmul.mubr.f32.gmra.mrb[0].mxu0 %v425
  %v528 = vpop.f32.mrb[0].mxu0
  %v529 = vadd.f32 0.0, %v528
  %v530 = vpop.f32.mrb[0].mxu0
  %531 = vdwg.mxu0
  %v533 = vsel %vm402, %v378, 0
  %v536 = vsel %vm402, %v379, 0
  %v539 = vsel %vm402, %v380, 0
  %v542 = vsel %vm402, %v381, 0
  %v545 = vsel %vm402, %v382, 0
  %v548 = vsel %vm402, %v383, 0
  %v551 = vsel %vm402, %v384, 0
  %v554 = vsel %vm402, %v385, 0
  %556 = vmatprep.subr.mxu0 0.0
  %557 = vmatpush1.msra.mxu0 %v387
  %558 = vmatprep.subr.mxu0 0.0
  %559 = vmatpush1.msra.mxu0 %v389
  %560 = vmatprep.subr.mxu0 0.0
  %561 = vmatpush1.msra.mxu0 %v391
  %562 = vmatprep.subr.mxu0 0.0
  %563 = vmatpush1.msra.mxu0 %v393
  %564 = vmatprep.subr.mxu0 0.0
  %565 = vmatpush1.msra.mxu0 0.0
  %566 = vmatprep.subr.mxu0 0.0
  %567 = vmatpush1.msra.mxu0 0.0
  %568 = vmatprep.subr.mxu0 0.0
  %569 = vmatpush1.msra.mxu0 0.0
  %570 = vmatprep.subr.mxu0 0.0
  %571 = vmatpush1.msra.mxu0 0.0
  %572 = vmatprep.subr.mxu0 0.0
  %573 = vmatpush1.msra.mxu0 0.0
  %574 = vmatprep.subr.mxu0 0.0
  %575 = vmatpush1.msra.mxu0 0.0
  %576 = vmatprep.subr.mxu0 0.0
  %577 = vmatpush1.msra.mxu0 0.0
  %578 = vmatprep.subr.mxu0 0.0
  %579 = vmatpush1.msra.mxu0 0.0
  %580 = vmatprep.subr.mxu0 0.0
  %581 = vmatpush1.msra.mxu0 0.0
  %582 = vmatprep.subr.mxu0 0.0
  %583 = vmatpush1.msra.mxu0 0.0
  %584 = vmatprep.subr.mxu0 0.0
  %585 = vmatpush1.msra.mxu0 0.0
  %586 = vmatprep.subr.mxu0 0.0
  %587 = vmatpush1.msra.mxu0 0.0
  %588 = vmatprep.subr.mxu0 0.0
  %589 = vmatpush1.msra.mxu0 0.0
  %590 = vmatprep.subr.mxu0 0.0
  %591 = vmatpush1.msra.mxu0 0.0
  %592 = vmatprep.subr.mxu0 0.0
  %593 = vmatpush1.msra.mxu0 0.0
  %594 = vmatprep.subr.mxu0 0.0
  %595 = vmatpush1.msra.mxu0 0.0
  %596 = vmatprep.subr.mxu0 0.0
  %597 = vmatpush1.msra.mxu0 0.0
  %598 = vmatprep.subr.mxu0 0.0
  %599 = vmatpush1.msra.mxu0 0.0
  %600 = vmatprep.subr.mxu0 0.0
  %601 = vmatpush1.msra.mxu0 0.0
  %602 = vmatprep.subr.mxu0 0.0
  %603 = vmatpush1.msra.mxu0 0.0
  %604 = vmatprep.subr.mxu0 0.0
  %605 = vmatpush1.msra.mxu0 0.0
  %606 = vmatprep.subr.mxu0 0.0
  %607 = vmatpush1.msra.mxu0 0.0
  %608 = vmatprep.subr.mxu0 0.0
  %609 = vmatpush1.msra.mxu0 0.0
  %610 = vmatprep.subr.mxu0 0.0
  %611 = vmatpush1.msra.mxu0 0.0
  %612 = vmatprep.subr.mxu0 0.0
  %613 = vmatpush1.msra.mxu0 0.0
  %614 = vmatprep.subr.mxu0 0.0
  %615 = vmatpush1.msra.mxu0 0.0
  %616 = vmatprep.subr.mxu0 0.0
  %617 = vmatpush1.msra.mxu0 0.0
  %618 = vmatprep.subr.mxu0 0.0
  %619 = vmatpush1.msra.mxu0 0.0
  %620 = vmatprep.mubr.f32.mxu0 0.0
  %621 = vmatmul.mubr.f32.gmra.mrb[0].mxu0 %v533
  %v622 = vpop.f32.mrb[0].mxu0
  %v623 = vadd.f32 %v494, %v622
  %v624 = vpop.f32.mrb[0].mxu0
  %625 = vmatprep.mubr.f32.mxu0 0.0
  %626 = vmatmul.mubr.f32.gmra.mrb[0].mxu0 %v536
  %v627 = vpop.f32.mrb[0].mxu0
  %v628 = vadd.f32 %v499, %v627
  %v629 = vpop.f32.mrb[0].mxu0
  %630 = vmatprep.mubr.f32.mxu0 0.0
  %631 = vmatmul.mubr.f32.gmra.mrb[0].mxu0 %v539
  %v632 = vpop.f32.mrb[0].mxu0
  %v633 = vadd.f32 %v504, %v632
  %v634 = vpop.f32.mrb[0].mxu0
  %635 = vmatprep.mubr.f32.mxu0 0.0
  %636 = vmatmul.mubr.f32.gmra.mrb[0].mxu0 %v542
  %v637 = vpop.f32.mrb[0].mxu0
  %v638 = vadd.f32 %v509, %v637
  %v639 = vpop.f32.mrb[0].mxu0
  %640 = vmatprep.mubr.f32.mxu0 0.0
  %641 = vmatmul.mubr.f32.gmra.mrb[0].mxu0 %v545
  %v642 = vpop.f32.mrb[0].mxu0
  %v643 = vadd.f32 %v514, %v642
  %v644 = vpop.f32.mrb[0].mxu0
  %645 = vmatprep.mubr.f32.mxu0 0.0
  %646 = vmatmul.mubr.f32.gmra.mrb[0].mxu0 %v548
  %v647 = vpop.f32.mrb[0].mxu0
  %v648 = vadd.f32 %v519, %v647
  %v649 = vpop.f32.mrb[0].mxu0
  %650 = vmatprep.mubr.f32.mxu0 0.0
  %651 = vmatmul.mubr.f32.gmra.mrb[0].mxu0 %v551
  %v652 = vpop.f32.mrb[0].mxu0
  %v653 = vadd.f32 %v524, %v652
  %v654 = vpop.f32.mrb[0].mxu0
  %655 = vmatprep.mubr.f32.mxu0 0.0
  %656 = vmatmul.mubr.f32.gmra.mrb[0].mxu0 %v554
  %v657 = vpop.f32.mrb[0].mxu0
  %v658 = vadd.f32 %v529, %v657
  %v659 = vpop.f32.mrb[0].mxu0
  %660 = vdwg.mxu0
  %v661 = vld [vmem:[%s6] sm:$0xff]
  %v662 = vld [vmem:[%s6 + $0x8] sm:$0xff]
  %v663 = vld [vmem:[%s6 + $0x10] sm:$0xff]
  %v664 = vld [vmem:[%s6 + $0x18] sm:$0xff]
  %v665 = vld [vmem:[%s6 + $0x20] sm:$0xff]
  %v666 = vld [vmem:[%s6 + $0x28] sm:$0xff]
  %v667 = vld [vmem:[%s6 + $0x30] sm:$0xff]
  %v668 = vld [vmem:[%s6 + $0x38] sm:$0xff]
  %669 = vrot.lane.b32.xlu0 %v374, 127
  %v670 = vpop.permute.xlu0 %669
  %671 = vrot.lane.b32.xlu0 %v375, 127
  %v672 = vpop.permute.xlu0 %671
  %673 = vrot.lane.b32.xlu0 %v376, 127
  %v674 = vpop.permute.xlu0 %673
  %675 = vrot.lane.b32.xlu0 %v377, 127
  %v676 = vpop.permute.xlu0 %675
  %v678 = vsel %vm402, %v661, 0
  %v681 = vsel %vm402, %v662, 0
  %v684 = vsel %vm402, %v663, 0
  %v687 = vsel %vm402, %v664, 0
  %v690 = vsel %vm402, %v665, 0
  %v693 = vsel %vm402, %v666, 0
  %v696 = vsel %vm402, %v667, 0
  %v699 = vsel %vm402, %v668, 0
  %701 = vmatprep.subr.mxu0 0.0
  %702 = vmatpush1.msra.mxu0 %v670
  %703 = vmatprep.subr.mxu0 0.0
  %704 = vmatpush1.msra.mxu0 %v672
  %705 = vmatprep.subr.mxu0 0.0
  %706 = vmatpush1.msra.mxu0 %v674
  %707 = vmatprep.subr.mxu0 0.0
  %708 = vmatpush1.msra.mxu0 %v676
  %709 = vmatprep.subr.mxu0 0.0
  %710 = vmatpush1.msra.mxu0 0.0
  %711 = vmatprep.subr.mxu0 0.0
  %712 = vmatpush1.msra.mxu0 0.0
  %713 = vmatprep.subr.mxu0 0.0
  %714 = vmatpush1.msra.mxu0 0.0
  %715 = vmatprep.subr.mxu0 0.0
  %716 = vmatpush1.msra.mxu0 0.0
  %717 = vmatprep.subr.mxu0 0.0
  %718 = vmatpush1.msra.mxu0 0.0
  %719 = vmatprep.subr.mxu0 0.0
  %720 = vmatpush1.msra.mxu0 0.0
  %721 = vmatprep.subr.mxu0 0.0
  %722 = vmatpush1.msra.mxu0 0.0
  %723 = vmatprep.subr.mxu0 0.0
  %724 = vmatpush1.msra.mxu0 0.0
  %725 = vmatprep.subr.mxu0 0.0
  %726 = vmatpush1.msra.mxu0 0.0
  %727 = vmatprep.subr.mxu0 0.0
  %728 = vmatpush1.msra.mxu0 0.0
  %729 = vmatprep.subr.mxu0 0.0
  %730 = vmatpush1.msra.mxu0 0.0
  %731 = vmatprep.subr.mxu0 0.0
  %732 = vmatpush1.msra.mxu0 0.0
  %733 = vmatprep.subr.mxu0 0.0
  %734 = vmatpush1.msra.mxu0 0.0
  %735 = vmatprep.subr.mxu0 0.0
  %736 = vmatpush1.msra.mxu0 0.0
  %737 = vmatprep.subr.mxu0 0.0
  %738 = vmatpush1.msra.mxu0 0.0
  %739 = vmatprep.subr.mxu0 0.0
  %740 = vmatpush1.msra.mxu0 0.0
  %741 = vmatprep.subr.mxu0 0.0
  %742 = vmatpush1.msra.mxu0 0.0
  %743 = vmatprep.subr.mxu0 0.0
  %744 = vmatpush1.msra.mxu0 0.0
  %745 = vmatprep.subr.mxu0 0.0
  %746 = vmatpush1.msra.mxu0 0.0
  %747 = vmatprep.subr.mxu0 0.0
  %748 = vmatpush1.msra.mxu0 0.0
  %749 = vmatprep.subr.mxu0 0.0
  %750 = vmatpush1.msra.mxu0 0.0
  %751 = vmatprep.subr.mxu0 0.0
  %752 = vmatpush1.msra.mxu0 0.0
  %753 = vmatprep.subr.mxu0 0.0
  %754 = vmatpush1.msra.mxu0 0.0
  %755 = vmatprep.subr.mxu0 0.0
  %756 = vmatpush1.msra.mxu0 0.0
  %757 = vmatprep.subr.mxu0 0.0
  %758 = vmatpush1.msra.mxu0 0.0
  %759 = vmatprep.subr.mxu0 0.0
  %760 = vmatpush1.msra.mxu0 0.0
  %761 = vmatprep.subr.mxu0 0.0
  %762 = vmatpush1.msra.mxu0 0.0
  %763 = vmatprep.subr.mxu0 0.0
  %764 = vmatpush1.msra.mxu0 0.0
  %765 = vmatprep.mubr.f32.mxu0 0.0
  %766 = vmatmul.mubr.f32.gmra.mrb[0].mxu0 %v678
  %v767 = vpop.f32.mrb[0].mxu0
  %v768 = vadd.f32 0.0, %v767
  %v769 = vpop.f32.mrb[0].mxu0
  %770 = vmatprep.mubr.f32.mxu0 0.0
  %771 = vmatmul.mubr.f32.gmra.mrb[0].mxu0 %v681
  %v772 = vpop.f32.mrb[0].mxu0
  %v773 = vadd.f32 0.0, %v772
  %v774 = vpop.f32.mrb[0].mxu0
  %775 = vmatprep.mubr.f32.mxu0 0.0
  %776 = vmatmul.mubr.f32.gmra.mrb[0].mxu0 %v684
  %v777 = vpop.f32.mrb[0].mxu0
  %v778 = vadd.f32 0.0, %v777
  %v779 = vpop.f32.mrb[0].mxu0
  %780 = vmatprep.mubr.f32.mxu0 0.0
  %781 = vmatmul.mubr.f32.gmra.mrb[0].mxu0 %v687
  %v782 = vpop.f32.mrb[0].mxu0
  %v783 = vadd.f32 0.0, %v782
  %v784 = vpop.f32.mrb[0].mxu0
  %785 = vmatprep.mubr.f32.mxu0 0.0
  %786 = vmatmul.mubr.f32.gmra.mrb[0].mxu0 %v690
  %v787 = vpop.f32.mrb[0].mxu0
  %v788 = vadd.f32 0.0, %v787
  %v789 = vpop.f32.mrb[0].mxu0
  %790 = vmatprep.mubr.f32.mxu0 0.0
  %791 = vmatmul.mubr.f32.gmra.mrb[0].mxu0 %v693
  %v792 = vpop.f32.mrb[0].mxu0
  %v793 = vadd.f32 0.0, %v792
  %v794 = vpop.f32.mrb[0].mxu0
  %795 = vmatprep.mubr.f32.mxu0 0.0
  %796 = vmatmul.mubr.f32.gmra.mrb[0].mxu0 %v696
  %v797 = vpop.f32.mrb[0].mxu0
  %v798 = vadd.f32 0.0, %v797
  %v799 = vpop.f32.mrb[0].mxu0
  %800 = vmatprep.mubr.f32.mxu0 0.0
  %801 = vmatmul.mubr.f32.gmra.mrb[0].mxu0 %v699
  %v802 = vpop.f32.mrb[0].mxu0
  %v803 = vadd.f32 0.0, %v802
  %v804 = vpop.f32.mrb[0].mxu0
  %805 = vdwg.mxu0
  %v806 = vadd.f32 %v623, %v768
  %v807 = vadd.f32 %v628, %v773
  %v808 = vadd.f32 %v633, %v778
  %v809 = vadd.f32 %v638, %v783
  %v810 = vadd.f32 %v643, %v788
  %v811 = vadd.f32 %v648, %v793
  %v812 = vadd.f32 %v653, %v798
  %v813 = vadd.f32 %v658, %v803
  %v814 = vld [vmem:[%s7] sm:$0xff]
  %v815 = vld [vmem:[%s7 + $0x8] sm:$0xff]
  %v816 = vld [vmem:[%s7 + $0x10] sm:$0xff]
  %v817 = vld [vmem:[%s7 + $0x18] sm:$0xff]
  %v818 = vld [vmem:[%s7 + $0x20] sm:$0xff]
  %v819 = vld [vmem:[%s7 + $0x28] sm:$0xff]
  %v820 = vld [vmem:[%s7 + $0x30] sm:$0xff]
  %v821 = vld [vmem:[%s7 + $0x38] sm:$0xff]
  %823 = vset.pattern.permute.xlu0 0
  %824 = vperm.xlu0 %823, %v814
  %v825 = vpop.permute.xlu0 %824
  %828 = vset.pattern.permute.xlu0 0
  %829 = vperm.xlu0 %828, %v815
  %v830 = vpop.permute.xlu0 %829
  %833 = vset.pattern.permute.xlu0 0
  %834 = vperm.xlu0 %833, %v816
  %v835 = vpop.permute.xlu0 %834
  %838 = vset.pattern.permute.xlu0 0
  %839 = vperm.xlu0 %838, %v817
  %v840 = vpop.permute.xlu0 %839
  %843 = vset.pattern.permute.xlu0 0
  %844 = vperm.xlu0 %843, %v818
  %v845 = vpop.permute.xlu0 %844
  %848 = vset.pattern.permute.xlu0 0
  %849 = vperm.xlu0 %848, %v819
  %v850 = vpop.permute.xlu0 %849
  %853 = vset.pattern.permute.xlu0 0
  %854 = vperm.xlu0 %853, %v820
  %v855 = vpop.permute.xlu0 %854
  %858 = vset.pattern.permute.xlu0 0
  %859 = vperm.xlu0 %858, %v821
  %v860 = vpop.permute.xlu0 %859
  %v862 = vadd.f32 %v806, %v825
  %v863 = vadd.f32 %v807, %v830
  %v864 = vadd.f32 %v808, %v835
  %v865 = vadd.f32 %v809, %v840
  %v866 = vadd.f32 %v810, %v845
  %v867 = vadd.f32 %v811, %v850
  %v868 = vadd.f32 %v812, %v855
  %v869 = vadd.f32 %v813, %v860
  %v870 = vmax.f32 %v862, 0.0
  %v871 = vmax.f32 %v863, 0.0
  %v872 = vmax.f32 %v864, 0.0
  %v873 = vmax.f32 %v865, 0.0
  %v874 = vmax.f32 %v866, 0.0
  %v875 = vmax.f32 %v867, 0.0
  %v876 = vmax.f32 %v868, 0.0
  %v877 = vmax.f32 %v869, 0.0
  %v878 = vld [vmem:[%s8] sm:$0xff]
  %v879 = vld [vmem:[%s8 + $0x8] sm:$0xff]
  %v880 = vld [vmem:[%s8 + $0x10] sm:$0xff]
  %v881 = vld [vmem:[%s8 + $0x18] sm:$0xff]
  %v882 = vld [vmem:[%s8 + $0x20] sm:$0xff]
  %v883 = vld [vmem:[%s8 + $0x28] sm:$0xff]
  %v884 = vld [vmem:[%s8 + $0x30] sm:$0xff]
  %v885 = vld [vmem:[%s8 + $0x38] sm:$0xff]
  %v886 = vld [vmem:[%s8 + $0x40] sm:$0xff]
  %v887 = vld [vmem:[%s8 + $0x48] sm:$0xff]
  %v888 = vld [vmem:[%s8 + $0x50] sm:$0xff]
  %v889 = vld [vmem:[%s8 + $0x58] sm:$0xff]
  %v890 = vld [vmem:[%s8 + $0x60] sm:$0xff]
  %v891 = vld [vmem:[%s8 + $0x68] sm:$0xff]
  %v892 = vld [vmem:[%s8 + $0x70] sm:$0xff]
  %v893 = vld [vmem:[%s8 + $0x78] sm:$0xff]
  %v894 = vld [vmem:[%s8 + $0x80] sm:$0xff]
  %v895 = vld [vmem:[%s8 + $0x88] sm:$0xff]
  %v896 = vld [vmem:[%s8 + $0x90] sm:$0xff]
  %v897 = vld [vmem:[%s8 + $0x98] sm:$0xff]
  %v898 = vld [vmem:[%s8 + $0xa0] sm:$0xff]
  %v899 = vld [vmem:[%s8 + $0xa8] sm:$0xff]
  %v900 = vld [vmem:[%s8 + $0xb0] sm:$0xff]
  %v901 = vld [vmem:[%s8 + $0xb8] sm:$0xff]
  %v902 = vld [vmem:[%s8 + $0xc0] sm:$0xff]
  %v903 = vld [vmem:[%s8 + $0xc8] sm:$0xff]
  %v904 = vld [vmem:[%s8 + $0xd0] sm:$0xff]
  %v905 = vld [vmem:[%s8 + $0xd8] sm:$0xff]
  %v906 = vld [vmem:[%s8 + $0xe0] sm:$0xff]
  %v907 = vld [vmem:[%s8 + $0xe8] sm:$0xff]
  %v908 = vld [vmem:[%s8 + $0xf0] sm:$0xff]
  %v909 = vld [vmem:[%s8 + $0xf8] sm:$0xff]
  %v910 = vld [vmem:[%s8 + $0x100] sm:$0xff]
  %v911 = vld [vmem:[%s8 + $0x108] sm:$0xff]
  %v912 = vld [vmem:[%s8 + $0x110] sm:$0xff]
  %v913 = vld [vmem:[%s8 + $0x118] sm:$0xff]
  %v914 = vld [vmem:[%s8 + $0x120] sm:$0xff]
  %v915 = vld [vmem:[%s8 + $0x128] sm:$0xff]
  %v916 = vld [vmem:[%s8 + $0x130] sm:$0xff]
  %v917 = vld [vmem:[%s8 + $0x138] sm:$0xff]
  %v918 = vld [vmem:[%s8 + $0x140] sm:$0xff]
  %v919 = vld [vmem:[%s8 + $0x148] sm:$0xff]
  %v920 = vld [vmem:[%s8 + $0x150] sm:$0xff]
  %v921 = vld [vmem:[%s8 + $0x158] sm:$0xff]
  %v922 = vld [vmem:[%s8 + $0x160] sm:$0xff]
  %v923 = vld [vmem:[%s8 + $0x168] sm:$0xff]
  %v924 = vld [vmem:[%s8 + $0x170] sm:$0xff]
  %v925 = vld [vmem:[%s8 + $0x178] sm:$0xff]
  %926 = vmatprep.subr.mxu0 %v879
  %927 = vmatpush1.msra.mxu0 %v878
  %928 = vmatprep.subr.mxu0 %v882
  %929 = vmatpush1.msra.mxu0 %v881
  %930 = vmatprep.subr.mxu0 %v885
  %931 = vmatpush1.msra.mxu0 %v884
  %932 = vmatprep.subr.mxu0 %v888
  %933 = vmatpush1.msra.mxu0 %v887
  %934 = vmatprep.subr.mxu0 %v891
  %935 = vmatpush1.msra.mxu0 %v890
  %936 = vmatprep.subr.mxu0 %v894
  %937 = vmatpush1.msra.mxu0 %v893
  %938 = vmatprep.subr.mxu0 %v897
  %939 = vmatpush1.msra.mxu0 %v896
  %940 = vmatprep.subr.mxu0 %v900
  %941 = vmatpush1.msra.mxu0 %v899
  %942 = vmatprep.subr.mxu0 %v903
  %943 = vmatpush1.msra.mxu0 %v902
  %944 = vmatprep.subr.mxu0 %v906
  %945 = vmatpush1.msra.mxu0 %v905
  %946 = vmatprep.subr.mxu0 %v909
  %947 = vmatpush1.msra.mxu0 %v908
  %948 = vmatprep.subr.mxu0 %v912
  %949 = vmatpush1.msra.mxu0 %v911
  %950 = vmatprep.subr.mxu0 %v915
  %951 = vmatpush1.msra.mxu0 %v914
  %952 = vmatprep.subr.mxu0 %v918
  %953 = vmatpush1.msra.mxu0 %v917
  %954 = vmatprep.subr.mxu0 %v921
  %955 = vmatpush1.msra.mxu0 %v920
  %956 = vmatprep.subr.mxu0 %v924
  %957 = vmatpush1.msra.mxu0 %v923
  %958 = vmatprep.subr.mxu0 0.0
  %959 = vmatpush1.msra.mxu0 0.0
  %960 = vmatprep.subr.mxu0 0.0
  %961 = vmatpush1.msra.mxu0 0.0
  %962 = vmatprep.subr.mxu0 0.0
  %963 = vmatpush1.msra.mxu0 0.0
  %964 = vmatprep.subr.mxu0 0.0
  %965 = vmatpush1.msra.mxu0 0.0
  %966 = vmatprep.subr.mxu0 0.0
  %967 = vmatpush1.msra.mxu0 0.0
  %968 = vmatprep.subr.mxu0 0.0
  %969 = vmatpush1.msra.mxu0 0.0
  %970 = vmatprep.subr.mxu0 0.0
  %971 = vmatpush1.msra.mxu0 0.0
  %972 = vmatprep.subr.mxu0 0.0
  %973 = vmatpush1.msra.mxu0 0.0
  %974 = vmatprep.subr.mxu0 0.0
  %975 = vmatpush1.msra.mxu0 0.0
  %976 = vmatprep.subr.mxu0 0.0
  %977 = vmatpush1.msra.mxu0 0.0
  %978 = vmatprep.subr.mxu0 0.0
  %979 = vmatpush1.msra.mxu0 0.0
  %980 = vmatprep.subr.mxu0 0.0
  %981 = vmatpush1.msra.mxu0 0.0
  %982 = vmatprep.subr.mxu0 0.0
  %983 = vmatpush1.msra.mxu0 0.0
  %984 = vmatprep.subr.mxu0 0.0
  %985 = vmatpush1.msra.mxu0 0.0
  %986 = vmatprep.subr.mxu0 0.0
  %987 = vmatpush1.msra.mxu0 0.0
  %988 = vmatprep.subr.mxu0 0.0
  %989 = vmatpush1.msra.mxu0 0.0
  %990 = vmatprep.mubr.f32.mxu0 0.0
  %991 = vmatmul.mubr.f32.gmra.mrb[0].mxu0 %v870
  %v992 = vpop.f32.mrb[0].mxu0
  %v993 = vadd.f32 0.0, %v992
  %v994 = vpop.f32.mrb[0].mxu0
  %v995 = vadd.f32 0.0, %v994
  %996 = vmatprep.mubr.f32.mxu0 0.0
  %997 = vmatmul.mubr.f32.gmra.mrb[0].mxu0 %v871
  %v998 = vpop.f32.mrb[0].mxu0
  %v999 = vadd.f32 0.0, %v998
  %v1000 = vpop.f32.mrb[0].mxu0
  %v1001 = vadd.f32 0.0, %v1000
  %1002 = vmatprep.mubr.f32.mxu0 0.0
  %1003 = vmatmul.mubr.f32.gmra.mrb[0].mxu0 %v872
  %v1004 = vpop.f32.mrb[0].mxu0
  %v1005 = vadd.f32 0.0, %v1004
  %v1006 = vpop.f32.mrb[0].mxu0
  %v1007 = vadd.f32 0.0, %v1006
  %1008 = vmatprep.mubr.f32.mxu0 0.0
  %1009 = vmatmul.mubr.f32.gmra.mrb[0].mxu0 %v873
  %v1010 = vpop.f32.mrb[0].mxu0
  %v1011 = vadd.f32 0.0, %v1010
  %v1012 = vpop.f32.mrb[0].mxu0
  %v1013 = vadd.f32 0.0, %v1012
  %1014 = vmatprep.mubr.f32.mxu0 0.0
  %1015 = vmatmul.mubr.f32.gmra.mrb[0].mxu0 %v874
  %v1016 = vpop.f32.mrb[0].mxu0
  %v1017 = vadd.f32 0.0, %v1016
  %v1018 = vpop.f32.mrb[0].mxu0
  %v1019 = vadd.f32 0.0, %v1018
  %1020 = vmatprep.mubr.f32.mxu0 0.0
  %1021 = vmatmul.mubr.f32.gmra.mrb[0].mxu0 %v875
  %v1022 = vpop.f32.mrb[0].mxu0
  %v1023 = vadd.f32 0.0, %v1022
  %v1024 = vpop.f32.mrb[0].mxu0
  %v1025 = vadd.f32 0.0, %v1024
  %1026 = vmatprep.mubr.f32.mxu0 0.0
  %1027 = vmatmul.mubr.f32.gmra.mrb[0].mxu0 %v876
  %v1028 = vpop.f32.mrb[0].mxu0
  %v1029 = vadd.f32 0.0, %v1028
  %v1030 = vpop.f32.mrb[0].mxu0
  %v1031 = vadd.f32 0.0, %v1030
  %1032 = vmatprep.mubr.f32.mxu0 0.0
  %1033 = vmatmul.mubr.f32.gmra.mrb[0].mxu0 %v877
  %v1034 = vpop.f32.mrb[0].mxu0
  %v1035 = vadd.f32 0.0, %v1034
  %v1036 = vpop.f32.mrb[0].mxu0
  %v1037 = vadd.f32 0.0, %v1036
  %1038 = vdwg.mxu0
  %1039 = vmatprep.subr.mxu0 0.0
  %1040 = vmatpush1.msra.mxu0 %v880
  %1041 = vmatprep.subr.mxu0 0.0
  %1042 = vmatpush1.msra.mxu0 %v883
  %1043 = vmatprep.subr.mxu0 0.0
  %1044 = vmatpush1.msra.mxu0 %v886
  %1045 = vmatprep.subr.mxu0 0.0
  %1046 = vmatpush1.msra.mxu0 %v889
  %1047 = vmatprep.subr.mxu0 0.0
  %1048 = vmatpush1.msra.mxu0 %v892
  %1049 = vmatprep.subr.mxu0 0.0
  %1050 = vmatpush1.msra.mxu0 %v895
  %1051 = vmatprep.subr.mxu0 0.0
  %1052 = vmatpush1.msra.mxu0 %v898
  %1053 = vmatprep.subr.mxu0 0.0
  %1054 = vmatpush1.msra.mxu0 %v901
  %1055 = vmatprep.subr.mxu0 0.0
  %1056 = vmatpush1.msra.mxu0 %v904
  %1057 = vmatprep.subr.mxu0 0.0
  %1058 = vmatpush1.msra.mxu0 %v907
  %1059 = vmatprep.subr.mxu0 0.0
  %1060 = vmatpush1.msra.mxu0 %v910
  %1061 = vmatprep.subr.mxu0 0.0
  %1062 = vmatpush1.msra.mxu0 %v913
  %1063 = vmatprep.subr.mxu0 0.0
  %1064 = vmatpush1.msra.mxu0 %v916
  %1065 = vmatprep.subr.mxu0 0.0
  %1066 = vmatpush1.msra.mxu0 %v919
  %1067 = vmatprep.subr.mxu0 0.0
  %1068 = vmatpush1.msra.mxu0 %v922
  %1069 = vmatprep.subr.mxu0 0.0
  %1070 = vmatpush1.msra.mxu0 %v925
  %1071 = vmatprep.subr.mxu0 0.0
  %1072 = vmatpush1.msra.mxu0 0.0
  %1073 = vmatprep.subr.mxu0 0.0
  %1074 = vmatpush1.msra.mxu0 0.0
  %1075 = vmatprep.subr.mxu0 0.0
  %1076 = vmatpush1.msra.mxu0 0.0
  %1077 = vmatprep.subr.mxu0 0.0
  %1078 = vmatpush1.msra.mxu0 0.0
  %1079 = vmatprep.subr.mxu0 0.0
  %1080 = vmatpush1.msra.mxu0 0.0
  %1081 = vmatprep.subr.mxu0 0.0
  %1082 = vmatpush1.msra.mxu0 0.0
  %1083 = vmatprep.subr.mxu0 0.0
  %1084 = vmatpush1.msra.mxu0 0.0
  %1085 = vmatprep.subr.mxu0 0.0
  %1086 = vmatpush1.msra.mxu0 0.0
  %1087 = vmatprep.subr.mxu0 0.0
  %1088 = vmatpush1.msra.mxu0 0.0
  %1089 = vmatprep.subr.mxu0 0.0
  %1090 = vmatpush1.msra.mxu0 0.0
  %1091 = vmatprep.subr.mxu0 0.0
  %1092 = vmatpush1.msra.mxu0 0.0
  %1093 = vmatprep.subr.mxu0 0.0
  %1094 = vmatpush1.msra.mxu0 0.0
  %1095 = vmatprep.subr.mxu0 0.0
  %1096 = vmatpush1.msra.mxu0 0.0
  %1097 = vmatprep.subr.mxu0 0.0
  %1098 = vmatpush1.msra.mxu0 0.0
  %1099 = vmatprep.subr.mxu0 0.0
  %1100 = vmatpush1.msra.mxu0 0.0
  %1101 = vmatprep.subr.mxu0 0.0
  %1102 = vmatpush1.msra.mxu0 0.0
  %1103 = vmatprep.mubr.f32.mxu0 0.0
  %1104 = vmatmul.mubr.f32.gmra.mrb[0].mxu0 %v870
  %v1105 = vpop.f32.mrb[0].mxu0
  %v1106 = vadd.f32 0.0, %v1105
  %v1107 = vpop.f32.mrb[0].mxu0
  %1108 = vmatprep.mubr.f32.mxu0 0.0
  %1109 = vmatmul.mubr.f32.gmra.mrb[0].mxu0 %v871
  %v1110 = vpop.f32.mrb[0].mxu0
  %v1111 = vadd.f32 0.0, %v1110
  %v1112 = vpop.f32.mrb[0].mxu0
  %1113 = vmatprep.mubr.f32.mxu0 0.0
  %1114 = vmatmul.mubr.f32.gmra.mrb[0].mxu0 %v872
  %v1115 = vpop.f32.mrb[0].mxu0
  %v1116 = vadd.f32 0.0, %v1115
  %v1117 = vpop.f32.mrb[0].mxu0
  %1118 = vmatprep.mubr.f32.mxu0 0.0
  %1119 = vmatmul.mubr.f32.gmra.mrb[0].mxu0 %v873
  %v1120 = vpop.f32.mrb[0].mxu0
  %v1121 = vadd.f32 0.0, %v1120
  %v1122 = vpop.f32.mrb[0].mxu0
  %1123 = vmatprep.mubr.f32.mxu0 0.0
  %1124 = vmatmul.mubr.f32.gmra.mrb[0].mxu0 %v874
  %v1125 = vpop.f32.mrb[0].mxu0
  %v1126 = vadd.f32 0.0, %v1125
  %v1127 = vpop.f32.mrb[0].mxu0
  %1128 = vmatprep.mubr.f32.mxu0 0.0
  %1129 = vmatmul.mubr.f32.gmra.mrb[0].mxu0 %v875
  %v1130 = vpop.f32.mrb[0].mxu0
  %v1131 = vadd.f32 0.0, %v1130
  %v1132 = vpop.f32.mrb[0].mxu0
  %1133 = vmatprep.mubr.f32.mxu0 0.0
  %1134 = vmatmul.mubr.f32.gmra.mrb[0].mxu0 %v876
  %v1135 = vpop.f32.mrb[0].mxu0
  %v1136 = vadd.f32 0.0, %v1135
  %v1137 = vpop.f32.mrb[0].mxu0
  %1138 = vmatprep.mubr.f32.mxu0 0.0
  %1139 = vmatmul.mubr.f32.gmra.mrb[0].mxu0 %v877
  %v1140 = vpop.f32.mrb[0].mxu0
  %v1141 = vadd.f32 0.0, %v1140
  %v1142 = vpop.f32.mrb[0].mxu0
  %1143 = vdwg.mxu0
  %v1144 = vmax.f32 %v993, %v995
  %v1145 = vmax.f32 %v999, %v1001
  %v1146 = vmax.f32 %v1005, %v1007
  %v1147 = vmax.f32 %v1011, %v1013
  %v1148 = vmax.f32 %v1017, %v1019
  %v1149 = vmax.f32 %v1023, %v1025
  %v1150 = vmax.f32 %v1029, %v1031
  %v1151 = vmax.f32 %v1035, %v1037
  %v1152 = vmax.f32 %v1144, %v1106
  %v1153 = vmax.f32 %v1145, %v1111
  %v1154 = vmax.f32 %v1146, %v1116
  %v1155 = vmax.f32 %v1147, %v1121
  %v1156 = vmax.f32 %v1148, %v1126
  %v1157 = vmax.f32 %v1149, %v1131
  %v1158 = vmax.f32 %v1150, %v1136
  %v1159 = vmax.f32 %v1151, %v1141
  %1160 = vst [vmem:[%s9] sm:$0xff] %v1152
  %1161 = vst [vmem:[%s9 + $0x8] sm:$0xff] %v1153
  %1162 = vst [vmem:[%s9 + $0x10] sm:$0xff] %v1154
  %1163 = vst [vmem:[%s9 + $0x18] sm:$0xff] %v1155
  %1164 = vst [vmem:[%s9 + $0x20] sm:$0xff] %v1156
  %1165 = vst [vmem:[%s9 + $0x28] sm:$0xff] %v1157
  %1166 = vst [vmem:[%s9 + $0x30] sm:$0xff] %v1158
  %1167 = vst [vmem:[%s9 + $0x38] sm:$0xff] %v1159
  // Predicated region
  $region38: #{_fused_feature_extractor.1} parent=0 // pred_check
    _
  $region39: #{_fused_feature_extractor.1} parent=0 // pred_check_branch
    %1169 = sbr.rel (0) target = $region41
  $region40: #{_fused_feature_extractor.1} parent=0 // pred_region
    _
  $region41: #{_fused_feature_extractor.1} parent=0 // pred_fallthru
    _
  // Predicated region
  $region42: #{_fused_feature_extractor.1} parent=0 // pred_check
    _
  $region43: #{_fused_feature_extractor.1} parent=0 // pred_check_branch
    %1171 = sbr.rel (0) target = $region45
  $region44: #{_fused_feature_extractor.1} parent=0 // pred_region
    _
  $region45: #{_fused_feature_extractor.1} parent=0 // pred_fallthru
    _

</llo_original>
